<compile_context>
chip_gen: v5e
topology: v5e:2x2
jax: 0.10.0
libtpu: 0.0.40
codegen_flags: <defaults>
</compile_context>

<pallas_src>
import math

import jax
import jax.numpy as jnp
from jax.experimental import pallas as pl
from jax.experimental.pallas import tpu as pltpu


def _bert_embedding_kernel(ids_ref, table_ref, out_ref):
    # ids_ref   : (3, TILE_M) int32   rows = [token_id, V + segment_id, V + G + position]
    # table_ref : (R_pad, E)  float32 fused table [tok_table ; seg_table ; pe[:S] ; zero pad]
    # out_ref   : (TILE_M, E) float32
    R = table_ref.shape[0]
    tile_m = ids_ref.shape[1]

    ids = ids_ref[...]                                               # (3, TILE_M)
    rows = jax.lax.broadcasted_iota(jnp.int32, (R, tile_m), 0)       # fused-row axis leading
    onehot = ((rows == ids[0:1, :]) |
              (rows == ids[1:2, :]) |
              (rows == ids[2:3, :])).astype(jnp.float32)             # (R, TILE_M): 3 ones/col

    # Single MXU pass contracting the fused-row axis -> tok + seg + pos, (TILE_M, E).
    # HIGHEST precision keeps the f32 gather exact (one-hot entries are exactly 1.0).
    out_ref[...] = jax.lax.dot_general(
        onehot, table_ref[...],
        dimension_numbers=(((0,), (0,)), ((), ())),
        preferred_element_type=jnp.float32,
        precision=jax.lax.Precision.HIGHEST)


def _choose_tile_m(M):
    """Size / chip-generation aware token-tile size."""
    # Tiny problem: one sublane-aligned tile -> no id padding / output slicing
    # whenever M itself is a multiple of 8.
    if M <= 256:
        return max(8, pl.cdiv(M, 8) * 8)
    kind = jax.devices()[0].device_kind.lower()
    # v5e has a 128-wide MXU; v6e/v7x have 256-wide MXUs -- only move to 256
    # once M >= 512 so the "parallel" grid keeps >= 2 tiles (v7x has 2 TCs).
    if ("v5" in kind) or (M < 512):
        return 128
    return 256


def make_fused_table(tok_table, seg_table, pe_table, seq_len):
    """Build the fused [token ; segment ; positional] lookup table ONCE at init.

    Hoisted out of the forward wrapper: it only depends on parameters, and at
    BERT scale rebuilding it per forward would re-stream the whole table
    through HBM as a separate un-hidden XLA op.
    """
    V, E = tok_table.shape
    G = seg_table.shape[0]
    R = V + G + seq_len
    R_pad = pl.cdiv(R, 8) * 8
    return jnp.concatenate(
        [tok_table.astype(jnp.float32),
         seg_table.astype(jnp.float32),
         pe_table[:seq_len].astype(jnp.float32),          # self.pe[:, :x.size(1)]
         jnp.zeros((R_pad - R, E), jnp.float32)], axis=0)


def bert_embedding(sequence, segment_label, fused_table, vocab_size, num_segments,
                   *, tile_m=None):
    """BERTEmbedding forward (dropout = identity / eval mode)."""
    B, S = sequence.shape
    R_pad, E = fused_table.shape
    V, G = vocab_size, num_segments

    M = B * S
    if tile_m is None:
        tile_m = _choose_tile_m(M)
    M_pad = pl.cdiv(M, tile_m) * tile_m

    # Flat (3, M) id matrix: [token_id, V + segment_id, V + G + position].
    # Clamp raw ids into their own table range so OOB values cannot alias into
    # a different sub-table of the fused row axis.
    pos = jnp.tile(jnp.arange(S, dtype=jnp.int32), B)                 # position = flat_idx % S
    ids = jnp.stack([jnp.clip(sequence.reshape(M).astype(jnp.int32), 0, V - 1),
                     jnp.clip(segment_label.reshape(M).astype(jnp.int32), 0, G - 1) + V,
                     pos + V + G], axis=0)                            # (3, M)
    if M_pad != M:                     # pad only when needed (avoids an extra HBM copy)
        ids = jnp.pad(ids, ((0, 0), (0, M_pad - M)))

    out_flat = pl.pallas_call(
        _bert_embedding_kernel,
        out_shape=jax.ShapeDtypeStruct((M_pad, E), jnp.float32),
        grid_spec=pltpu.PrefetchScalarGridSpec(
            num_scalar_prefetch=0,
            grid=(M_pad // tile_m,),
            in_specs=[
                # ids for this token tile
                pl.BlockSpec((3, tile_m), lambda m: (0, m)),
                # fused table: grid-invariant -> single-buffered (no wasted
                # VMEM / DMA on a block that never changes)
                pl.BlockSpec((R_pad, E), lambda m: (0, 0),
                             pipeline_mode=pl.Buffered(buffer_count=1)),
            ],
            out_specs=pl.BlockSpec((tile_m, E), lambda m: (m, 0)),   # lane-dense output tile
        ),
        compiler_params=pltpu.CompilerParams(
            dimension_semantics=("parallel",)),
    )(ids, fused_table)

    if M_pad != M:                     # slice only when we actually padded
        out_flat = out_flat[:M]
    return out_flat.reshape(B, S, E)   # contiguous reshape: free metadata op


def make_positional_table(max_len, d_model):
    position = jnp.arange(max_len, dtype=jnp.float32)[:, None]               # (L, 1)
    div_term = jnp.exp(jnp.arange(0, d_model, 2, dtype=jnp.float32)
                       * (-(math.log(10000.0) / d_model)))                   # (E/2,)
    pe = jnp.zeros((max_len, d_model), dtype=jnp.float32)
    pe = pe.at[:, 0::2].set(jnp.sin(position * div_term))
    pe = pe.at[:, 1::2].set(jnp.cos(position * div_term))
    return pe


if __name__ == "__main__":
    # Module hyper-params (small, consistent with BERTEmbedding.__init__ defaults).
    vocab_size = 24
    max_len = 64
    seg_size = 4          # label value range; module builds SegmentEmbedding(embed_size, embed_size)
    embed_size = 128

    B, S = 2, 16

    key = jax.random.PRNGKey(0)
    k_tok, k_seg, k_ids, k_lbl = jax.random.split(key, 4)

    # nn.Embedding default init: N(0, 1); padding_idx=0 row zeroed.
    tok_table = jax.random.normal(k_tok, (vocab_size, embed_size), dtype=jnp.float32)
    tok_table = tok_table.at[0].set(0.0)
    # SegmentEmbedding(embed_size, embed_size) -> table is (embed_size, embed_size).
    seg_table = jax.random.normal(k_seg, (embed_size, embed_size), dtype=jnp.float32)
    seg_table = seg_table.at[0].set(0.0)

    pe_table = make_positional_table(max_len, embed_size)

    sequence = jax.random.randint(k_ids, (B, S), 0, vocab_size, dtype=jnp.int32)
    segment_label = jax.random.randint(k_lbl, (B, S), 0, seg_size, dtype=jnp.int32)

    # Fused table is a parameter-only quantity: build once, reuse every forward.
    fused_table = jax.block_until_ready(
        make_fused_table(tok_table, seg_table, pe_table, S))

    out = jax.block_until_ready(
        bert_embedding(sequence, segment_label, fused_table,
                       vocab_size, seg_table.shape[0]))

    # Pure-JAX reference (gather + broadcast add).
    ref = (jnp.take(tok_table, sequence, axis=0)
           + jnp.take(seg_table, segment_label, axis=0)
           + pe_table[None, :S, :])
    assert out.shape == (B, S, embed_size)
    assert jnp.allclose(out, ref, atol=1e-5, rtol=1e-5), float(jnp.max(jnp.abs(out - ref)))

    print("KERNEL_OK")
</pallas_src>

<mosaic_0001>
module attributes {stable_mosaic.version = 11 : i64} {
  func.func @_bert_embedding_kernel(%arg0: i32, %arg1: memref<3x32xi32, #tpu.memory_space<vmem>>, %arg2: memref<168x128xf32, #tpu.memory_space<vmem>>, %arg3: memref<32x128xf32, #tpu.memory_space<vmem>>) attributes {dimension_semantics = [#tpu.dimension_semantics<parallel>], iteration_bounds = array<i64: 1>, scalar_prefetch = 0 : i64, scratch_operands = 0 : i64, tpu.core_type = #tpu.core_type<tc>, window_params = [{transform_indices = @transform_0, window_bounds = array<i64: 3, 32>}, {pipeline_mode = #tpu.pipeline_mode<synchronous>, transform_indices = @transform_1, window_bounds = array<i64: 168, 128>}, {transform_indices = @transform_2, window_bounds = array<i64: 32, 128>}]} {
    %c0 = arith.constant 0 : index
    %c0_0 = arith.constant 0 : index
    %0 = vector.load %arg1[%c0, %c0_0] : memref<3x32xi32, #tpu.memory_space<vmem>>, vector<3x32xi32>
    %1 = tpu.iota {dimensions = array<i32: 0>} : vector<168x32xi32>
    %2 = vector.extract_strided_slice %0 {offsets = [0, 0], sizes = [1, 32], strides = [1, 1]} : vector<3x32xi32> to vector<1x32xi32>
    %3 = vector.broadcast %2 : vector<1x32xi32> to vector<168x32xi32>
    %4 = arith.cmpi eq, %1, %3 : vector<168x32xi32>
    %5 = vector.extract_strided_slice %0 {offsets = [1, 0], sizes = [1, 32], strides = [1, 1]} : vector<3x32xi32> to vector<1x32xi32>
    %6 = vector.broadcast %5 : vector<1x32xi32> to vector<168x32xi32>
    %7 = arith.cmpi eq, %1, %6 : vector<168x32xi32>
    %8 = arith.ori %4, %7 : vector<168x32xi1>
    %9 = vector.extract_strided_slice %0 {offsets = [2, 0], sizes = [1, 32], strides = [1, 1]} : vector<3x32xi32> to vector<1x32xi32>
    %10 = vector.broadcast %9 : vector<1x32xi32> to vector<168x32xi32>
    %11 = arith.cmpi eq, %1, %10 : vector<168x32xi32>
    %12 = arith.ori %8, %11 : vector<168x32xi1>
    %13 = arith.extui %12 : vector<168x32xi1> to vector<168x32xi32>
    %14 = arith.sitofp %13 : vector<168x32xi32> to vector<168x32xf32>
    %c0_1 = arith.constant 0 : index
    %c0_2 = arith.constant 0 : index
    %15 = vector.load %arg2[%c0_1, %c0_2] : memref<168x128xf32, #tpu.memory_space<vmem>>, vector<168x128xf32>
    %cst = arith.constant dense<0.000000e+00> : vector<32x128xf32>
    %16 = tpu.matmul %14, %15, %cst {dimension_numbers = #tpu.dot_dimension_numbers<[0], [0], [1], [1], [0, 1, 1, 1], [], []>, precision = #tpu.contract_precision<fp32>} : vector<168x32xf32>, vector<168x128xf32>, vector<32x128xf32> -> vector<32x128xf32>
    %c0_3 = arith.constant 0 : index
    %c0_4 = arith.constant 0 : index
    %17 = vector.load %arg3[%c0_3, %c0_4] : memref<32x128xf32, #tpu.memory_space<vmem>>, vector<32x128xf32>
    tpu.vector_store %arg3[%c0_3, %c0_4], %16 {strides = array<i32>} : memref<32x128xf32, #tpu.memory_space<vmem>>, vector<32x128xf32>,
    return
  }
  func.func @transform_0(%arg0: i32) -> (i32, i32) {
    %c0_i32 = arith.constant 0 : i32
    %c0_i32_0 = arith.constant 0 : i32
    return %c0_i32, %arg0 : i32, i32
  }
  func.func @transform_1(%arg0: i32) -> (i32, i32) {
    %c0_i32 = arith.constant 0 : i32
    %c0_i32_0 = arith.constant 0 : i32
    %c0_i32_1 = arith.constant 0 : i32
    return %c0_i32, %c0_i32_0 : i32, i32
  }
  func.func @transform_2(%arg0: i32) -> (i32, i32) {
    %c0_i32 = arith.constant 0 : i32
    %c0_i32_0 = arith.constant 0 : i32
    return %arg0, %c0_i32 : i32, i32
  }
}

</mosaic_0001>

<llo_original>
// kernel: tpu_custom_call.1
$region0: #{tpu_custom_call.1}
  #allocation0 [shape = 'u32[]', space=smem, size = 0x4, offset = 0x4, fixed_abs, tag = 'smem constant byte address 0x4 - core index']
  #allocation1 [shape = 'u32[72,128]{1,0:T(1,128)}', space=vmem, size = 0x9000, scoped, tag = 'internal scratch']
  %s0 = inlined_call_operand.hbm [shape: s32[3,32], index: 0, kind: input, shape index: {}]
  %s1 = inlined_call_operand.hbm [shape: f32[168,128], index: 1, kind: input, shape index: {}]
  %s2 = inlined_call_operand.hbm [shape: f32[32,128], index: 2, kind: output, shape index: {}]
  %s3 = sld [smem:[#allocation0]]
  $region26: #{tpu_custom_call.1} parent=0
    _
  %s5 = ssub.s32 1, %s3
  %s6 = scalar_select 0, %s5, %s3
  $region1: #{tpu_custom_call.1} parent=0
    #allocation2 [shape = 'u8[2048]{0}', space=vmem, size = 0x800, scoped, tag = 'input window, operand 0, single buffered']
    #allocation3 [shape = 's32[1]{0}', space=sflag, size = 0x4, scoped, tag = 'scoped memory for tpu_custom_call.1']
    #allocation4 [shape = 's32[1]{0}', space=sflag, size = 0x4, scoped, tag = 'scoped memory for tpu_custom_call.1']
    #allocation5 [shape = 'u8[86016]{0}', space=vmem, size = 0x15000, scoped, tag = 'input window, operand 1, single buffered']
    #allocation6 [shape = 's32[1]{0}', space=sflag, size = 0x4, scoped, tag = 'scoped memory for tpu_custom_call.1']
    #allocation7 [shape = 'u8[16384]{0}', space=vmem, size = 0x4000, scoped, tag = 'output window, operand 0, single buffered']
    %7 = vsyncpa [#allocation3], 0
    %8 = vsyncpa [#allocation6], 0
    %9 = vsyncpa [#allocation4], 0
    // Predicated region
    $region2: #{tpu_custom_call.1} parent=1 // pred_check
      _
    $region3: #{tpu_custom_call.1} parent=1 // pred_check_branch
      %11 = sbr.rel (0) target = $region5
    $region4: #{tpu_custom_call.1} parent=1 // pred_region
      %13 = vsyncadd [#allocation3], 0
      %s15 = sshll.u32 %s0, 4
      %s16 = int_to_ptr.hbm [resolvable:$true] %s15
      %s17 = sshll.u32 [#allocation2], 4
      %s18 = int_to_ptr.vmem [resolvable:$true] %s17
      %20 = dma.hbm_to_vmem [thread:$0]  %s16, 64, %s18, [#allocation3]
    $region5: #{tpu_custom_call.1} parent=1 // pred_fallthru
      _
    // Predicated region
    $region6: #{tpu_custom_call.1} parent=1 // pred_check
      _
    $region7: #{tpu_custom_call.1} parent=1 // pred_check_branch
      %22 = sbr.rel (0) target = $region9
    $region8: #{tpu_custom_call.1} parent=1 // pred_region
      %24 = vsyncadd [#allocation6], 0
      %s25 = sshll.u32 %s1, 4
      %s26 = int_to_ptr.hbm [resolvable:$true] %s25
      %s27 = sshll.u32 [#allocation5], 4
      %s28 = int_to_ptr.vmem [resolvable:$true] %s27
      %33 = dma.hbm_to_vmem [thread:$0]  %s26, 2688, %s28, [#allocation6], 128, 128, 8
    $region9: #{tpu_custom_call.1} parent=1 // pred_fallthru
      _
    // Predicated region
    $region10: #{tpu_custom_call.1} parent=1 // pred_check
      _
    $region11: #{tpu_custom_call.1} parent=1 // pred_check_branch
      %35 = sbr.rel (0) target = $region13
    $region12: #{tpu_custom_call.1} parent=1 // pred_region
      %37 = dma.done [#allocation3], 64
    $region13: #{tpu_custom_call.1} parent=1 // pred_fallthru
      _
    // Predicated region
    $region14: #{tpu_custom_call.1} parent=1 // pred_check
      _
    $region15: #{tpu_custom_call.1} parent=1 // pred_check_branch
      %39 = sbr.rel (0) target = $region17
    $region16: #{tpu_custom_call.1} parent=1 // pred_region
      %41 = dma.done [#allocation6], 2688
    $region17: #{tpu_custom_call.1} parent=1 // pred_fallthru
      _
    %v42 = vld [vmem:[#allocation2] sm:$0x7]
    %v43 = vlaneseq
    %v44 = vshrl.u32 %v43, 7
    %v45 = vadd.s32 %v44, 8
    %v46 = vadd.s32 %v44, 16
    %v47 = vadd.s32 %v44, 24
    %v48 = vadd.s32 %v44, 32
    %v49 = vadd.s32 %v44, 40
    %v50 = vadd.s32 %v44, 48
    %v51 = vadd.s32 %v44, 56
    %v52 = vadd.s32 %v44, 64
    %v53 = vadd.s32 %v44, 72
    %v54 = vadd.s32 %v44, 80
    %v55 = vadd.s32 %v44, 88
    %v56 = vadd.s32 %v44, 96
    %v57 = vadd.s32 %v44, 104
    %v58 = vadd.s32 %v44, 112
    %v59 = vadd.s32 %v44, 120
    %v60 = vadd.s32 %v44, 128
    %v61 = vadd.s32 %v44, 136
    %v62 = vadd.s32 %v44, 144
    %v63 = vadd.s32 %v44, 152
    %v64 = vadd.s32 %v44, 160
    %v65 = vperm.slane %v42, 0
    %vm66 = vcmp.eq.s32.totalorder %v44, %v65
    %vm67 = vcmp.eq.s32.totalorder %v45, %v65
    %vm68 = vcmp.eq.s32.totalorder %v46, %v65
    %vm69 = vcmp.eq.s32.totalorder %v47, %v65
    %vm70 = vcmp.eq.s32.totalorder %v48, %v65
    %vm71 = vcmp.eq.s32.totalorder %v49, %v65
    %vm72 = vcmp.eq.s32.totalorder %v50, %v65
    %vm73 = vcmp.eq.s32.totalorder %v51, %v65
    %vm74 = vcmp.eq.s32.totalorder %v52, %v65
    %vm75 = vcmp.eq.s32.totalorder %v53, %v65
    %vm76 = vcmp.eq.s32.totalorder %v54, %v65
    %vm77 = vcmp.eq.s32.totalorder %v55, %v65
    %vm78 = vcmp.eq.s32.totalorder %v56, %v65
    %vm79 = vcmp.eq.s32.totalorder %v57, %v65
    %vm80 = vcmp.eq.s32.totalorder %v58, %v65
    %vm81 = vcmp.eq.s32.totalorder %v59, %v65
    %vm82 = vcmp.eq.s32.totalorder %v60, %v65
    %vm83 = vcmp.eq.s32.totalorder %v61, %v65
    %vm84 = vcmp.eq.s32.totalorder %v62, %v65
    %vm85 = vcmp.eq.s32.totalorder %v63, %v65
    %vm86 = vcmp.eq.s32.totalorder %v64, %v65
    %v87 = vperm.slane %v42, 1
    %vm88 = vcmp.eq.s32.totalorder %v44, %v87
    %vm89 = vcmp.eq.s32.totalorder %v45, %v87
    %vm90 = vcmp.eq.s32.totalorder %v46, %v87
    %vm91 = vcmp.eq.s32.totalorder %v47, %v87
    %vm92 = vcmp.eq.s32.totalorder %v48, %v87
    %vm93 = vcmp.eq.s32.totalorder %v49, %v87
    %vm94 = vcmp.eq.s32.totalorder %v50, %v87
    %vm95 = vcmp.eq.s32.totalorder %v51, %v87
    %vm96 = vcmp.eq.s32.totalorder %v52, %v87
    %vm97 = vcmp.eq.s32.totalorder %v53, %v87
    %vm98 = vcmp.eq.s32.totalorder %v54, %v87
    %vm99 = vcmp.eq.s32.totalorder %v55, %v87
    %vm100 = vcmp.eq.s32.totalorder %v56, %v87
    %vm101 = vcmp.eq.s32.totalorder %v57, %v87
    %vm102 = vcmp.eq.s32.totalorder %v58, %v87
    %vm103 = vcmp.eq.s32.totalorder %v59, %v87
    %vm104 = vcmp.eq.s32.totalorder %v60, %v87
    %vm105 = vcmp.eq.s32.totalorder %v61, %v87
    %vm106 = vcmp.eq.s32.totalorder %v62, %v87
    %vm107 = vcmp.eq.s32.totalorder %v63, %v87
    %vm108 = vcmp.eq.s32.totalorder %v64, %v87
    %vm109 = vmor %vm66, %vm88
    %vm110 = vmor %vm67, %vm89
    %vm111 = vmor %vm68, %vm90
    %vm112 = vmor %vm69, %vm91
    %vm113 = vmor %vm70, %vm92
    %vm114 = vmor %vm71, %vm93
    %vm115 = vmor %vm72, %vm94
    %vm116 = vmor %vm73, %vm95
    %vm117 = vmor %vm74, %vm96
    %vm118 = vmor %vm75, %vm97
    %vm119 = vmor %vm76, %vm98
    %vm120 = vmor %vm77, %vm99
    %vm121 = vmor %vm78, %vm100
    %vm122 = vmor %vm79, %vm101
    %vm123 = vmor %vm80, %vm102
    %vm124 = vmor %vm81, %vm103
    %vm125 = vmor %vm82, %vm104
    %vm126 = vmor %vm83, %vm105
    %vm127 = vmor %vm84, %vm106
    %vm128 = vmor %vm85, %vm107
    %vm129 = vmor %vm86, %vm108
    %v130 = vperm.slane %v42, 2
    %vm131 = vcmp.eq.s32.totalorder %v44, %v130
    %vm132 = vcmp.eq.s32.totalorder %v45, %v130
    %vm133 = vcmp.eq.s32.totalorder %v46, %v130
    %vm134 = vcmp.eq.s32.totalorder %v47, %v130
    %vm135 = vcmp.eq.s32.totalorder %v48, %v130
    %vm136 = vcmp.eq.s32.totalorder %v49, %v130
    %vm137 = vcmp.eq.s32.totalorder %v50, %v130
    %vm138 = vcmp.eq.s32.totalorder %v51, %v130
    %vm139 = vcmp.eq.s32.totalorder %v52, %v130
    %vm140 = vcmp.eq.s32.totalorder %v53, %v130
    %vm141 = vcmp.eq.s32.totalorder %v54, %v130
    %vm142 = vcmp.eq.s32.totalorder %v55, %v130
    %vm143 = vcmp.eq.s32.totalorder %v56, %v130
    %vm144 = vcmp.eq.s32.totalorder %v57, %v130
    %vm145 = vcmp.eq.s32.totalorder %v58, %v130
    %vm146 = vcmp.eq.s32.totalorder %v59, %v130
    %vm147 = vcmp.eq.s32.totalorder %v60, %v130
    %vm148 = vcmp.eq.s32.totalorder %v61, %v130
    %vm149 = vcmp.eq.s32.totalorder %v62, %v130
    %vm150 = vcmp.eq.s32.totalorder %v63, %v130
    %vm151 = vcmp.eq.s32.totalorder %v64, %v130
    %vm152 = vmor %vm109, %vm131
    %vm153 = vmor %vm110, %vm132
    %vm154 = vmor %vm111, %vm133
    %vm155 = vmor %vm112, %vm134
    %vm156 = vmor %vm113, %vm135
    %vm157 = vmor %vm114, %vm136
    %vm158 = vmor %vm115, %vm137
    %vm159 = vmor %vm116, %vm138
    %vm160 = vmor %vm117, %vm139
    %vm161 = vmor %vm118, %vm140
    %vm162 = vmor %vm119, %vm141
    %vm163 = vmor %vm120, %vm142
    %vm164 = vmor %vm121, %vm143
    %vm165 = vmor %vm122, %vm144
    %vm166 = vmor %vm123, %vm145
    %vm167 = vmor %vm124, %vm146
    %vm168 = vmor %vm125, %vm147
    %vm169 = vmor %vm126, %vm148
    %vm170 = vmor %vm127, %vm149
    %vm171 = vmor %vm128, %vm150
    %vm172 = vmor %vm129, %vm151
    %v173 = vsel %vm152, 1, 0
    %v174 = vsel %vm153, 1, 0
    %v175 = vsel %vm154, 1, 0
    %v176 = vsel %vm155, 1, 0
    %v177 = vsel %vm156, 1, 0
    %v178 = vsel %vm157, 1, 0
    %v179 = vsel %vm158, 1, 0
    %v180 = vsel %vm159, 1, 0
    %v181 = vsel %vm160, 1, 0
    %v182 = vsel %vm161, 1, 0
    %v183 = vsel %vm162, 1, 0
    %v184 = vsel %vm163, 1, 0
    %v185 = vsel %vm164, 1, 0
    %v186 = vsel %vm165, 1, 0
    %v187 = vsel %vm166, 1, 0
    %v188 = vsel %vm167, 1, 0
    %v189 = vsel %vm168, 1, 0
    %v190 = vsel %vm169, 1, 0
    %v191 = vsel %vm170, 1, 0
    %v192 = vsel %vm171, 1, 0
    %v193 = vsel %vm172, 1, 0
    %v194 = vcvt.s32.f32 %v173
    %v195 = vcvt.s32.f32 %v174
    %v196 = vcvt.s32.f32 %v175
    %v197 = vcvt.s32.f32 %v176
    %v198 = vcvt.s32.f32 %v177
    %v199 = vcvt.s32.f32 %v178
    %v200 = vcvt.s32.f32 %v179
    %v201 = vcvt.s32.f32 %v180
    %v202 = vcvt.s32.f32 %v181
    %v203 = vcvt.s32.f32 %v182
    %v204 = vcvt.s32.f32 %v183
    %v205 = vcvt.s32.f32 %v184
    %v206 = vcvt.s32.f32 %v185
    %v207 = vcvt.s32.f32 %v186
    %v208 = vcvt.s32.f32 %v187
    %v209 = vcvt.s32.f32 %v188
    %v210 = vcvt.s32.f32 %v189
    %v211 = vcvt.s32.f32 %v190
    %v212 = vcvt.s32.f32 %v191
    %v213 = vcvt.s32.f32 %v192
    %v214 = vcvt.s32.f32 %v193
    %v215 = vld [vmem:[#allocation5] sm:$0xff]
    %v216 = vld [vmem:[#allocation5 + $0x8] sm:$0xff]
    %v217 = vld [vmem:[#allocation5 + $0x10] sm:$0xff]
    %v218 = vld [vmem:[#allocation5 + $0x18] sm:$0xff]
    %v219 = vld [vmem:[#allocation5 + $0x20] sm:$0xff]
    %v220 = vld [vmem:[#allocation5 + $0x28] sm:$0xff]
    %v221 = vld [vmem:[#allocation5 + $0x30] sm:$0xff]
    %v222 = vld [vmem:[#allocation5 + $0x38] sm:$0xff]
    %v223 = vld [vmem:[#allocation5 + $0x40] sm:$0xff]
    %v224 = vld [vmem:[#allocation5 + $0x48] sm:$0xff]
    %v225 = vld [vmem:[#allocation5 + $0x50] sm:$0xff]
    %v226 = vld [vmem:[#allocation5 + $0x58] sm:$0xff]
    %v227 = vld [vmem:[#allocation5 + $0x60] sm:$0xff]
    %v228 = vld [vmem:[#allocation5 + $0x68] sm:$0xff]
    %v229 = vld [vmem:[#allocation5 + $0x70] sm:$0xff]
    %v230 = vld [vmem:[#allocation5 + $0x78] sm:$0xff]
    %v231 = vld [vmem:[#allocation5 + $0x80] sm:$0xff]
    %v232 = vld [vmem:[#allocation5 + $0x88] sm:$0xff]
    %v233 = vld [vmem:[#allocation5 + $0x90] sm:$0xff]
    %v234 = vld [vmem:[#allocation5 + $0x98] sm:$0xff]
    %v235 = vld [vmem:[#allocation5 + $0xa0] sm:$0xff]
    %236 = vxpose.xlu0.b32.start [1/16] %v194, 128
    %237 = vxpose.xlu0.b32.cont [2/16] %v195, 128
    %238 = vxpose.xlu0.b32.cont [3/16] %v196, 128
    %239 = vxpose.xlu0.b32.cont [4/16] %v197, 128
    %240 = vxpose.xlu0.b32.cont [5/16] %v198, 128
    %241 = vxpose.xlu0.b32.cont [6/16] %v199, 128
    %242 = vxpose.xlu0.b32.cont [7/16] %v200, 128
    %243 = vxpose.xlu0.b32.cont [8/16] %v201, 128
    %244 = vxpose.xlu0.b32.cont [9/16] %v202, 128
    %245 = vxpose.xlu0.b32.cont [10/16] %v203, 128
    %246 = vxpose.xlu0.b32.cont [11/16] %v204, 128
    %247 = vxpose.xlu0.b32.cont [12/16] %v205, 128
    %248 = vxpose.xlu0.b32.cont [13/16] %v206, 128
    %249 = vxpose.xlu0.b32.cont [14/16] %v207, 128
    %250 = vxpose.xlu0.b32.cont [15/16] %v208, 128
    %251 = vxpose.xlu0.b32.end [16/16] %v209, 128
    %v252 = vpop.trf.xlu0
    %v253 = vpop.trf.xlu0
    %v254 = vpop.trf.xlu0
    %v255 = vpop.trf.xlu0
    %v256 = vpop.trf.xlu0
    %v257 = vpop.trf.xlu0
    %v258 = vpop.trf.xlu0
    %v259 = vpop.trf.xlu0
    %v260 = vpop.trf.xlu0
    %v261 = vpop.trf.xlu0
    %v262 = vpop.trf.xlu0
    %v263 = vpop.trf.xlu0
    %v264 = vpop.trf.xlu0
    %v265 = vpop.trf.xlu0
    %v266 = vpop.trf.xlu0
    %v267 = vpop.trf.xlu0
    %268 = vxpose.xlu0.b32.start [1/16] %v210, 128
    %269 = vxpose.xlu0.b32.cont [2/16] %v211, 128
    %270 = vxpose.xlu0.b32.cont [3/16] %v212, 128
    %271 = vxpose.xlu0.b32.cont [4/16] %v213, 128
    %272 = vxpose.xlu0.b32.cont [5/16] %v214, 128
    %273 = vxpose.xlu0.b32.cont [6/16] 0.0, 128
    %274 = vxpose.xlu0.b32.cont [7/16] 0.0, 128
    %275 = vxpose.xlu0.b32.cont [8/16] 0.0, 128
    %276 = vxpose.xlu0.b32.cont [9/16] 0.0, 128
    %277 = vxpose.xlu0.b32.cont [10/16] 0.0, 128
    %278 = vxpose.xlu0.b32.cont [11/16] 0.0, 128
    %279 = vxpose.xlu0.b32.cont [12/16] 0.0, 128
    %280 = vxpose.xlu0.b32.cont [13/16] 0.0, 128
    %281 = vxpose.xlu0.b32.cont [14/16] 0.0, 128
    %282 = vxpose.xlu0.b32.cont [15/16] 0.0, 128
    %283 = vxpose.xlu0.b32.end [16/16] 0.0, 128
    %v284 = vpop.trf.xlu0
    %v285 = vpop.trf.xlu0
    %v286 = vpop.trf.xlu0
    %v287 = vpop.trf.xlu0
    %v288 = vpop.trf.xlu0
    %v289 = vpop.trf.xlu0
    %v290 = vpop.trf.xlu0
    %v291 = vpop.trf.xlu0
    %v292 = vpop.trf.xlu0
    %v293 = vpop.trf.xlu0
    %v294 = vpop.trf.xlu0
    %v295 = vpop.trf.xlu0
    %v296 = vpop.trf.xlu0
    %v297 = vpop.trf.xlu0
    %v298 = vpop.trf.xlu0
    %v299 = vpop.trf.xlu0
    %vm300 = vcmask 326656
    %v302 = vsel %vm300, %v284, 0
    %v305 = vsel %vm300, %v285, 0
    %v308 = vsel %vm300, %v286, 0
    %v311 = vsel %vm300, %v287, 0
    %v313 = vand.u32 %v230, 4294901760
    %314 = vmatpush.msra.mxu0 %v313
    %v315 = vand.u32 %v229, 4294901760
    %316 = vmatpush.msra.mxu0 %v315
    %v317 = vand.u32 %v228, 4294901760
    %318 = vmatpush.msra.mxu0 %v317
    %v319 = vand.u32 %v227, 4294901760
    %320 = vmatpush.msra.mxu0 %v319
    %v321 = vand.u32 %v226, 4294901760
    %322 = vmatpush.msra.mxu0 %v321
    %v323 = vand.u32 %v225, 4294901760
    %324 = vmatpush.msra.mxu0 %v323
    %v325 = vand.u32 %v224, 4294901760
    %326 = vmatpush.msra.mxu0 %v325
    %v327 = vand.u32 %v223, 4294901760
    %328 = vmatpush.msra.mxu0 %v327
    %v329 = vand.u32 %v222, 4294901760
    %330 = vmatpush.msra.mxu0 %v329
    %v331 = vand.u32 %v221, 4294901760
    %332 = vmatpush.msra.mxu0 %v331
    %v333 = vand.u32 %v220, 4294901760
    %334 = vmatpush.msra.mxu0 %v333
    %v335 = vand.u32 %v219, 4294901760
    %336 = vmatpush.msra.mxu0 %v335
    %v337 = vand.u32 %v218, 4294901760
    %338 = vmatpush.msra.mxu0 %v337
    %v339 = vand.u32 %v217, 4294901760
    %340 = vmatpush.msra.mxu0 %v339
    %v341 = vand.u32 %v216, 4294901760
    %342 = vmatpush.msra.mxu0 %v341
    %v343 = vand.u32 %v215, 4294901760
    %344 = vmatpush.msra.mxu0 %v343
    %v345 = vand.u32 %v252, 4294901760
    %v346 = vsub.f32 %v252, %v345
    %v347 = vand.u32 %v346, 4294901760
    %v348 = vsub.f32 %v346, %v347
    %v349 = vand.u32 %v348, 4294901760
    %350 = vmatmul.f32.gmra.mxu0 %v349
    %v351 = vpop.f32.mrf.mxu0
    %v352 = vadd.f32 0.0, %v351
    %v353 = vand.u32 %v253, 4294901760
    %v354 = vsub.f32 %v253, %v353
    %v355 = vand.u32 %v354, 4294901760
    %v356 = vsub.f32 %v354, %v355
    %v357 = vand.u32 %v356, 4294901760
    %358 = vmatmul.f32.gmra.mxu0 %v357
    %v359 = vpop.f32.mrf.mxu0
    %v360 = vadd.f32 0.0, %v359
    %v361 = vand.u32 %v254, 4294901760
    %v362 = vsub.f32 %v254, %v361
    %v363 = vand.u32 %v362, 4294901760
    %v364 = vsub.f32 %v362, %v363
    %v365 = vand.u32 %v364, 4294901760
    %366 = vmatmul.f32.gmra.mxu0 %v365
    %v367 = vpop.f32.mrf.mxu0
    %v368 = vadd.f32 0.0, %v367
    %v369 = vand.u32 %v255, 4294901760
    %v370 = vsub.f32 %v255, %v369
    %v371 = vand.u32 %v370, 4294901760
    %v372 = vsub.f32 %v370, %v371
    %v373 = vand.u32 %v372, 4294901760
    %374 = vmatmul.f32.gmra.mxu0 %v373
    %v375 = vpop.f32.mrf.mxu0
    %v376 = vadd.f32 0.0, %v375
    %377 = vdwg.mxu0
    %v378 = vand.u32 %v230, 4294901760
    %v379 = vsub.f32 %v230, %v378
    %v380 = vand.u32 %v379, 4294901760
    %v381 = vsub.f32 %v379, %v380
    %v382 = vand.u32 %v381, 4294901760
    %383 = vmatpush.msra.mxu0 %v382
    %v384 = vand.u32 %v229, 4294901760
    %v385 = vsub.f32 %v229, %v384
    %v386 = vand.u32 %v385, 4294901760
    %v387 = vsub.f32 %v385, %v386
    %v388 = vand.u32 %v387, 4294901760
    %389 = vmatpush.msra.mxu0 %v388
    %v390 = vand.u32 %v228, 4294901760
    %v391 = vsub.f32 %v228, %v390
    %v392 = vand.u32 %v391, 4294901760
    %v393 = vsub.f32 %v391, %v392
    %v394 = vand.u32 %v393, 4294901760
    %395 = vmatpush.msra.mxu0 %v394
    %v396 = vand.u32 %v227, 4294901760
    %v397 = vsub.f32 %v227, %v396
    %v398 = vand.u32 %v397, 4294901760
    %v399 = vsub.f32 %v397, %v398
    %v400 = vand.u32 %v399, 4294901760
    %401 = vmatpush.msra.mxu0 %v400
    %v402 = vand.u32 %v226, 4294901760
    %v403 = vsub.f32 %v226, %v402
    %v404 = vand.u32 %v403, 4294901760
    %v405 = vsub.f32 %v403, %v404
    %v406 = vand.u32 %v405, 4294901760
    %407 = vmatpush.msra.mxu0 %v406
    %v408 = vand.u32 %v225, 4294901760
    %v409 = vsub.f32 %v225, %v408
    %v410 = vand.u32 %v409, 4294901760
    %v411 = vsub.f32 %v409, %v410
    %v412 = vand.u32 %v411, 4294901760
    %413 = vmatpush.msra.mxu0 %v412
    %v414 = vand.u32 %v224, 4294901760
    %v415 = vsub.f32 %v224, %v414
    %v416 = vand.u32 %v415, 4294901760
    %v417 = vsub.f32 %v415, %v416
    %v418 = vand.u32 %v417, 4294901760
    %419 = vmatpush.msra.mxu0 %v418
    %v420 = vand.u32 %v223, 4294901760
    %v421 = vsub.f32 %v223, %v420
    %v422 = vand.u32 %v421, 4294901760
    %v423 = vsub.f32 %v421, %v422
    %v424 = vand.u32 %v423, 4294901760
    %425 = vmatpush.msra.mxu0 %v424
    %v426 = vand.u32 %v222, 4294901760
    %v427 = vsub.f32 %v222, %v426
    %v428 = vand.u32 %v427, 4294901760
    %v429 = vsub.f32 %v427, %v428
    %v430 = vand.u32 %v429, 4294901760
    %431 = vmatpush.msra.mxu0 %v430
    %v432 = vand.u32 %v221, 4294901760
    %v433 = vsub.f32 %v221, %v432
    %v434 = vand.u32 %v433, 4294901760
    %v435 = vsub.f32 %v433, %v434
    %v436 = vand.u32 %v435, 4294901760
    %437 = vmatpush.msra.mxu0 %v436
    %v438 = vand.u32 %v220, 4294901760
    %v439 = vsub.f32 %v220, %v438
    %v440 = vand.u32 %v439, 4294901760
    %v441 = vsub.f32 %v439, %v440
    %v442 = vand.u32 %v441, 4294901760
    %443 = vmatpush.msra.mxu0 %v442
    %v444 = vand.u32 %v219, 4294901760
    %v445 = vsub.f32 %v219, %v444
    %v446 = vand.u32 %v445, 4294901760
    %v447 = vsub.f32 %v445, %v446
    %v448 = vand.u32 %v447, 4294901760
    %449 = vmatpush.msra.mxu0 %v448
    %v450 = vand.u32 %v218, 4294901760
    %v451 = vsub.f32 %v218, %v450
    %v452 = vand.u32 %v451, 4294901760
    %v453 = vsub.f32 %v451, %v452
    %v454 = vand.u32 %v453, 4294901760
    %455 = vmatpush.msra.mxu0 %v454
    %v456 = vand.u32 %v217, 4294901760
    %v457 = vsub.f32 %v217, %v456
    %v458 = vand.u32 %v457, 4294901760
    %v459 = vsub.f32 %v457, %v458
    %v460 = vand.u32 %v459, 4294901760
    %461 = vmatpush.msra.mxu0 %v460
    %v462 = vand.u32 %v216, 4294901760
    %v463 = vsub.f32 %v216, %v462
    %v464 = vand.u32 %v463, 4294901760
    %v465 = vsub.f32 %v463, %v464
    %v466 = vand.u32 %v465, 4294901760
    %467 = vmatpush.msra.mxu0 %v466
    %v468 = vand.u32 %v215, 4294901760
    %v469 = vsub.f32 %v215, %v468
    %v470 = vand.u32 %v469, 4294901760
    %v471 = vsub.f32 %v469, %v470
    %v472 = vand.u32 %v471, 4294901760
    %473 = vmatpush.msra.mxu0 %v472
    %v474 = vand.u32 %v252, 4294901760
    %475 = vmatmul.f32.gmra.mxu0 %v474
    %v476 = vpop.f32.mrf.mxu0
    %v477 = vadd.f32 %v352, %v476
    %v478 = vand.u32 %v253, 4294901760
    %479 = vmatmul.f32.gmra.mxu0 %v478
    %v480 = vpop.f32.mrf.mxu0
    %v481 = vadd.f32 %v360, %v480
    %v482 = vand.u32 %v254, 4294901760
    %483 = vmatmul.f32.gmra.mxu0 %v482
    %v484 = vpop.f32.mrf.mxu0
    %v485 = vadd.f32 %v368, %v484
    %v486 = vand.u32 %v255, 4294901760
    %487 = vmatmul.f32.gmra.mxu0 %v486
    %v488 = vpop.f32.mrf.mxu0
    %v489 = vadd.f32 %v376, %v488
    %490 = vdwg.mxu0
    %v491 = vand.u32 %v230, 4294901760
    %v492 = vsub.f32 %v230, %v491
    %493 = vmatpush.msra.mxu0 %v492
    %v494 = vand.u32 %v229, 4294901760
    %v495 = vsub.f32 %v229, %v494
    %496 = vmatpush.msra.mxu0 %v495
    %v497 = vand.u32 %v228, 4294901760
    %v498 = vsub.f32 %v228, %v497
    %499 = vmatpush.msra.mxu0 %v498
    %v500 = vand.u32 %v227, 4294901760
    %v501 = vsub.f32 %v227, %v500
    %502 = vmatpush.msra.mxu0 %v501
    %v503 = vand.u32 %v226, 4294901760
    %v504 = vsub.f32 %v226, %v503
    %505 = vmatpush.msra.mxu0 %v504
    %v506 = vand.u32 %v225, 4294901760
    %v507 = vsub.f32 %v225, %v506
    %508 = vmatpush.msra.mxu0 %v507
    %v509 = vand.u32 %v224, 4294901760
    %v510 = vsub.f32 %v224, %v509
    %511 = vmatpush.msra.mxu0 %v510
    %v512 = vand.u32 %v223, 4294901760
    %v513 = vsub.f32 %v223, %v512
    %514 = vmatpush.msra.mxu0 %v513
    %v515 = vand.u32 %v222, 4294901760
    %v516 = vsub.f32 %v222, %v515
    %517 = vmatpush.msra.mxu0 %v516
    %v518 = vand.u32 %v221, 4294901760
    %v519 = vsub.f32 %v221, %v518
    %520 = vmatpush.msra.mxu0 %v519
    %v521 = vand.u32 %v220, 4294901760
    %v522 = vsub.f32 %v220, %v521
    %523 = vmatpush.msra.mxu0 %v522
    %v524 = vand.u32 %v219, 4294901760
    %v525 = vsub.f32 %v219, %v524
    %526 = vmatpush.msra.mxu0 %v525
    %v527 = vand.u32 %v218, 4294901760
    %v528 = vsub.f32 %v218, %v527
    %529 = vmatpush.msra.mxu0 %v528
    %v530 = vand.u32 %v217, 4294901760
    %v531 = vsub.f32 %v217, %v530
    %532 = vmatpush.msra.mxu0 %v531
    %v533 = vand.u32 %v216, 4294901760
    %v534 = vsub.f32 %v216, %v533
    %535 = vmatpush.msra.mxu0 %v534
    %v536 = vand.u32 %v215, 4294901760
    %v537 = vsub.f32 %v215, %v536
    %538 = vmatpush.msra.mxu0 %v537
    %v539 = vand.u32 %v252, 4294901760
    %v540 = vsub.f32 %v252, %v539
    %541 = vmatmul.f32.gmra.mxu0 %v540
    %v542 = vpop.f32.mrf.mxu0
    %v543 = vadd.f32 %v477, %v542
    %v544 = vand.u32 %v253, 4294901760
    %v545 = vsub.f32 %v253, %v544
    %546 = vmatmul.f32.gmra.mxu0 %v545
    %v547 = vpop.f32.mrf.mxu0
    %v548 = vadd.f32 %v481, %v547
    %v549 = vand.u32 %v254, 4294901760
    %v550 = vsub.f32 %v254, %v549
    %551 = vmatmul.f32.gmra.mxu0 %v550
    %v552 = vpop.f32.mrf.mxu0
    %v553 = vadd.f32 %v485, %v552
    %v554 = vand.u32 %v255, 4294901760
    %v555 = vsub.f32 %v255, %v554
    %556 = vmatmul.f32.gmra.mxu0 %v555
    %v557 = vpop.f32.mrf.mxu0
    %v558 = vadd.f32 %v489, %v557
    %559 = vdwg.mxu0
    %v560 = vand.u32 %v230, 4294901760
    %561 = vmatpush.msra.mxu0 %v560
    %v562 = vand.u32 %v229, 4294901760
    %563 = vmatpush.msra.mxu0 %v562
    %v564 = vand.u32 %v228, 4294901760
    %565 = vmatpush.msra.mxu0 %v564
    %v566 = vand.u32 %v227, 4294901760
    %567 = vmatpush.msra.mxu0 %v566
    %v568 = vand.u32 %v226, 4294901760
    %569 = vmatpush.msra.mxu0 %v568
    %v570 = vand.u32 %v225, 4294901760
    %571 = vmatpush.msra.mxu0 %v570
    %v572 = vand.u32 %v224, 4294901760
    %573 = vmatpush.msra.mxu0 %v572
    %v574 = vand.u32 %v223, 4294901760
    %575 = vmatpush.msra.mxu0 %v574
    %v576 = vand.u32 %v222, 4294901760
    %577 = vmatpush.msra.mxu0 %v576
    %v578 = vand.u32 %v221, 4294901760
    %579 = vmatpush.msra.mxu0 %v578
    %v580 = vand.u32 %v220, 4294901760
    %581 = vmatpush.msra.mxu0 %v580
    %v582 = vand.u32 %v219, 4294901760
    %583 = vmatpush.msra.mxu0 %v582
    %v584 = vand.u32 %v218, 4294901760
    %585 = vmatpush.msra.mxu0 %v584
    %v586 = vand.u32 %v217, 4294901760
    %587 = vmatpush.msra.mxu0 %v586
    %v588 = vand.u32 %v216, 4294901760
    %589 = vmatpush.msra.mxu0 %v588
    %v590 = vand.u32 %v215, 4294901760
    %591 = vmatpush.msra.mxu0 %v590
    %v592 = vand.u32 %v252, 4294901760
    %v593 = vsub.f32 %v252, %v592
    %v594 = vand.u32 %v593, 4294901760
    %595 = vmatmul.f32.gmra.mxu0 %v594
    %v596 = vpop.f32.mrf.mxu0
    %v597 = vadd.f32 %v543, %v596
    %v598 = vand.u32 %v253, 4294901760
    %v599 = vsub.f32 %v253, %v598
    %v600 = vand.u32 %v599, 4294901760
    %601 = vmatmul.f32.gmra.mxu0 %v600
    %v602 = vpop.f32.mrf.mxu0
    %v603 = vadd.f32 %v548, %v602
    %v604 = vand.u32 %v254, 4294901760
    %v605 = vsub.f32 %v254, %v604
    %v606 = vand.u32 %v605, 4294901760
    %607 = vmatmul.f32.gmra.mxu0 %v606
    %v608 = vpop.f32.mrf.mxu0
    %v609 = vadd.f32 %v553, %v608
    %v610 = vand.u32 %v255, 4294901760
    %v611 = vsub.f32 %v255, %v610
    %v612 = vand.u32 %v611, 4294901760
    %613 = vmatmul.f32.gmra.mxu0 %v612
    %v614 = vpop.f32.mrf.mxu0
    %v615 = vadd.f32 %v558, %v614
    %616 = vdwg.mxu0
    %v617 = vand.u32 %v230, 4294901760
    %v618 = vsub.f32 %v230, %v617
    %v619 = vand.u32 %v618, 4294901760
    %620 = vmatpush.msra.mxu0 %v619
    %v621 = vand.u32 %v229, 4294901760
    %v622 = vsub.f32 %v229, %v621
    %v623 = vand.u32 %v622, 4294901760
    %624 = vmatpush.msra.mxu0 %v623
    %v625 = vand.u32 %v228, 4294901760
    %v626 = vsub.f32 %v228, %v625
    %v627 = vand.u32 %v626, 4294901760
    %628 = vmatpush.msra.mxu0 %v627
    %v629 = vand.u32 %v227, 4294901760
    %v630 = vsub.f32 %v227, %v629
    %v631 = vand.u32 %v630, 4294901760
    %632 = vmatpush.msra.mxu0 %v631
    %v633 = vand.u32 %v226, 4294901760
    %v634 = vsub.f32 %v226, %v633
    %v635 = vand.u32 %v634, 4294901760
    %636 = vmatpush.msra.mxu0 %v635
    %v637 = vand.u32 %v225, 4294901760
    %v638 = vsub.f32 %v225, %v637
    %v639 = vand.u32 %v638, 4294901760
    %640 = vmatpush.msra.mxu0 %v639
    %v641 = vand.u32 %v224, 4294901760
    %v642 = vsub.f32 %v224, %v641
    %v643 = vand.u32 %v642, 4294901760
    %644 = vmatpush.msra.mxu0 %v643
    %v645 = vand.u32 %v223, 4294901760
    %v646 = vsub.f32 %v223, %v645
    %v647 = vand.u32 %v646, 4294901760
    %648 = vmatpush.msra.mxu0 %v647
    %v649 = vand.u32 %v222, 4294901760
    %v650 = vsub.f32 %v222, %v649
    %v651 = vand.u32 %v650, 4294901760
    %652 = vmatpush.msra.mxu0 %v651
    %v653 = vand.u32 %v221, 4294901760
    %v654 = vsub.f32 %v221, %v653
    %v655 = vand.u32 %v654, 4294901760
    %656 = vmatpush.msra.mxu0 %v655
    %v657 = vand.u32 %v220, 4294901760
    %v658 = vsub.f32 %v220, %v657
    %v659 = vand.u32 %v658, 4294901760
    %660 = vmatpush.msra.mxu0 %v659
    %v661 = vand.u32 %v219, 4294901760
    %v662 = vsub.f32 %v219, %v661
    %v663 = vand.u32 %v662, 4294901760
    %664 = vmatpush.msra.mxu0 %v663
    %v665 = vand.u32 %v218, 4294901760
    %v666 = vsub.f32 %v218, %v665
    %v667 = vand.u32 %v666, 4294901760
    %668 = vmatpush.msra.mxu0 %v667
    %v669 = vand.u32 %v217, 4294901760
    %v670 = vsub.f32 %v217, %v669
    %v671 = vand.u32 %v670, 4294901760
    %672 = vmatpush.msra.mxu0 %v671
    %v673 = vand.u32 %v216, 4294901760
    %v674 = vsub.f32 %v216, %v673
    %v675 = vand.u32 %v674, 4294901760
    %676 = vmatpush.msra.mxu0 %v675
    %v677 = vand.u32 %v215, 4294901760
    %v678 = vsub.f32 %v215, %v677
    %v679 = vand.u32 %v678, 4294901760
    %680 = vmatpush.msra.mxu0 %v679
    %v681 = vand.u32 %v252, 4294901760
    %682 = vmatmul.f32.gmra.mxu0 %v681
    %v683 = vpop.f32.mrf.mxu0
    %v684 = vadd.f32 %v597, %v683
    %v685 = vand.u32 %v253, 4294901760
    %686 = vmatmul.f32.gmra.mxu0 %v685
    %v687 = vpop.f32.mrf.mxu0
    %v688 = vadd.f32 %v603, %v687
    %v689 = vand.u32 %v254, 4294901760
    %690 = vmatmul.f32.gmra.mxu0 %v689
    %v691 = vpop.f32.mrf.mxu0
    %v692 = vadd.f32 %v609, %v691
    %v693 = vand.u32 %v255, 4294901760
    %694 = vmatmul.f32.gmra.mxu0 %v693
    %v695 = vpop.f32.mrf.mxu0
    %v696 = vadd.f32 %v615, %v695
    %697 = vdwg.mxu0
    %v698 = vand.u32 %v230, 4294901760
    %699 = vmatpush.msra.mxu0 %v698
    %v700 = vand.u32 %v229, 4294901760
    %701 = vmatpush.msra.mxu0 %v700
    %v702 = vand.u32 %v228, 4294901760
    %703 = vmatpush.msra.mxu0 %v702
    %v704 = vand.u32 %v227, 4294901760
    %705 = vmatpush.msra.mxu0 %v704
    %v706 = vand.u32 %v226, 4294901760
    %707 = vmatpush.msra.mxu0 %v706
    %v708 = vand.u32 %v225, 4294901760
    %709 = vmatpush.msra.mxu0 %v708
    %v710 = vand.u32 %v224, 4294901760
    %711 = vmatpush.msra.mxu0 %v710
    %v712 = vand.u32 %v223, 4294901760
    %713 = vmatpush.msra.mxu0 %v712
    %v714 = vand.u32 %v222, 4294901760
    %715 = vmatpush.msra.mxu0 %v714
    %v716 = vand.u32 %v221, 4294901760
    %717 = vmatpush.msra.mxu0 %v716
    %v718 = vand.u32 %v220, 4294901760
    %719 = vmatpush.msra.mxu0 %v718
    %v720 = vand.u32 %v219, 4294901760
    %721 = vmatpush.msra.mxu0 %v720
    %v722 = vand.u32 %v218, 4294901760
    %723 = vmatpush.msra.mxu0 %v722
    %v724 = vand.u32 %v217, 4294901760
    %725 = vmatpush.msra.mxu0 %v724
    %v726 = vand.u32 %v216, 4294901760
    %727 = vmatpush.msra.mxu0 %v726
    %v728 = vand.u32 %v215, 4294901760
    %729 = vmatpush.msra.mxu0 %v728
    %v730 = vand.u32 %v252, 4294901760
    %731 = vmatmul.f32.gmra.mxu0 %v730
    %v732 = vpop.f32.mrf.mxu0
    %v733 = vadd.f32 %v684, %v732
    %v734 = vand.u32 %v253, 4294901760
    %735 = vmatmul.f32.gmra.mxu0 %v734
    %v736 = vpop.f32.mrf.mxu0
    %v737 = vadd.f32 %v688, %v736
    %v738 = vand.u32 %v254, 4294901760
    %739 = vmatmul.f32.gmra.mxu0 %v738
    %v740 = vpop.f32.mrf.mxu0
    %v741 = vadd.f32 %v692, %v740
    %v742 = vand.u32 %v255, 4294901760
    %743 = vmatmul.f32.gmra.mxu0 %v742
    %v744 = vpop.f32.mrf.mxu0
    %v745 = vadd.f32 %v696, %v744
    %746 = vdwg.mxu0
    %747 = vmatpush.msra.mxu0 0.0
    %748 = vmatpush.msra.mxu0 0.0
    %749 = vmatpush.msra.mxu0 0.0
    %750 = vmatpush.msra.mxu0 0.0
    %751 = vmatpush.msra.mxu0 0.0
    %752 = vmatpush.msra.mxu0 0.0
    %753 = vmatpush.msra.mxu0 0.0
    %754 = vmatpush.msra.mxu0 0.0
    %755 = vmatpush.msra.mxu0 0.0
    %756 = vmatpush.msra.mxu0 0.0
    %757 = vmatpush.msra.mxu0 0.0
    %v758 = vand.u32 %v235, 4294901760
    %759 = vmatpush.msra.mxu0 %v758
    %v760 = vand.u32 %v234, 4294901760
    %761 = vmatpush.msra.mxu0 %v760
    %v762 = vand.u32 %v233, 4294901760
    %763 = vmatpush.msra.mxu0 %v762
    %v764 = vand.u32 %v232, 4294901760
    %765 = vmatpush.msra.mxu0 %v764
    %v766 = vand.u32 %v231, 4294901760
    %767 = vmatpush.msra.mxu0 %v766
    %v768 = vand.u32 %v302, 4294901760
    %v769 = vsub.f32 %v302, %v768
    %v770 = vand.u32 %v769, 4294901760
    %v771 = vsub.f32 %v769, %v770
    %v772 = vand.u32 %v771, 4294901760
    %773 = vmatmul.f32.gmra.mxu0 %v772
    %v774 = vpop.f32.mrf.mxu0
    %v775 = vadd.f32 %v733, %v774
    %v776 = vand.u32 %v305, 4294901760
    %v777 = vsub.f32 %v305, %v776
    %v778 = vand.u32 %v777, 4294901760
    %v779 = vsub.f32 %v777, %v778
    %v780 = vand.u32 %v779, 4294901760
    %781 = vmatmul.f32.gmra.mxu0 %v780
    %v782 = vpop.f32.mrf.mxu0
    %v783 = vadd.f32 %v737, %v782
    %v784 = vand.u32 %v308, 4294901760
    %v785 = vsub.f32 %v308, %v784
    %v786 = vand.u32 %v785, 4294901760
    %v787 = vsub.f32 %v785, %v786
    %v788 = vand.u32 %v787, 4294901760
    %789 = vmatmul.f32.gmra.mxu0 %v788
    %v790 = vpop.f32.mrf.mxu0
    %v791 = vadd.f32 %v741, %v790
    %v792 = vand.u32 %v311, 4294901760
    %v793 = vsub.f32 %v311, %v792
    %v794 = vand.u32 %v793, 4294901760
    %v795 = vsub.f32 %v793, %v794
    %v796 = vand.u32 %v795, 4294901760
    %797 = vmatmul.f32.gmra.mxu0 %v796
    %v798 = vpop.f32.mrf.mxu0
    %v799 = vadd.f32 %v745, %v798
    %800 = vdwg.mxu0
    %801 = vmatpush.msra.mxu0 0.0
    %802 = vmatpush.msra.mxu0 0.0
    %803 = vmatpush.msra.mxu0 0.0
    %804 = vmatpush.msra.mxu0 0.0
    %805 = vmatpush.msra.mxu0 0.0
    %806 = vmatpush.msra.mxu0 0.0
    %807 = vmatpush.msra.mxu0 0.0
    %808 = vmatpush.msra.mxu0 0.0
    %809 = vmatpush.msra.mxu0 0.0
    %810 = vmatpush.msra.mxu0 0.0
    %811 = vmatpush.msra.mxu0 0.0
    %v812 = vand.u32 %v235, 4294901760
    %v813 = vsub.f32 %v235, %v812
    %v814 = vand.u32 %v813, 4294901760
    %v815 = vsub.f32 %v813, %v814
    %v816 = vand.u32 %v815, 4294901760
    %817 = vmatpush.msra.mxu0 %v816
    %v818 = vand.u32 %v234, 4294901760
    %v819 = vsub.f32 %v234, %v818
    %v820 = vand.u32 %v819, 4294901760
    %v821 = vsub.f32 %v819, %v820
    %v822 = vand.u32 %v821, 4294901760
    %823 = vmatpush.msra.mxu0 %v822
    %v824 = vand.u32 %v233, 4294901760
    %v825 = vsub.f32 %v233, %v824
    %v826 = vand.u32 %v825, 4294901760
    %v827 = vsub.f32 %v825, %v826
    %v828 = vand.u32 %v827, 4294901760
    %829 = vmatpush.msra.mxu0 %v828
    %v830 = vand.u32 %v232, 4294901760
    %v831 = vsub.f32 %v232, %v830
    %v832 = vand.u32 %v831, 4294901760
    %v833 = vsub.f32 %v831, %v832
    %v834 = vand.u32 %v833, 4294901760
    %835 = vmatpush.msra.mxu0 %v834
    %v836 = vand.u32 %v231, 4294901760
    %v837 = vsub.f32 %v231, %v836
    %v838 = vand.u32 %v837, 4294901760
    %v839 = vsub.f32 %v837, %v838
    %v840 = vand.u32 %v839, 4294901760
    %841 = vmatpush.msra.mxu0 %v840
    %v842 = vand.u32 %v302, 4294901760
    %843 = vmatmul.f32.gmra.mxu0 %v842
    %v844 = vpop.f32.mrf.mxu0
    %v845 = vadd.f32 %v775, %v844
    %v846 = vand.u32 %v305, 4294901760
    %847 = vmatmul.f32.gmra.mxu0 %v846
    %v848 = vpop.f32.mrf.mxu0
    %v849 = vadd.f32 %v783, %v848
    %v850 = vand.u32 %v308, 4294901760
    %851 = vmatmul.f32.gmra.mxu0 %v850
    %v852 = vpop.f32.mrf.mxu0
    %v853 = vadd.f32 %v791, %v852
    %v854 = vand.u32 %v311, 4294901760
    %855 = vmatmul.f32.gmra.mxu0 %v854
    %v856 = vpop.f32.mrf.mxu0
    %v857 = vadd.f32 %v799, %v856
    %858 = vdwg.mxu0
    %859 = vmatpush.msra.mxu0 0.0
    %860 = vmatpush.msra.mxu0 0.0
    %861 = vmatpush.msra.mxu0 0.0
    %862 = vmatpush.msra.mxu0 0.0
    %863 = vmatpush.msra.mxu0 0.0
    %864 = vmatpush.msra.mxu0 0.0
    %865 = vmatpush.msra.mxu0 0.0
    %866 = vmatpush.msra.mxu0 0.0
    %867 = vmatpush.msra.mxu0 0.0
    %868 = vmatpush.msra.mxu0 0.0
    %869 = vmatpush.msra.mxu0 0.0
    %v870 = vand.u32 %v235, 4294901760
    %v871 = vsub.f32 %v235, %v870
    %872 = vmatpush.msra.mxu0 %v871
    %v873 = vand.u32 %v234, 4294901760
    %v874 = vsub.f32 %v234, %v873
    %875 = vmatpush.msra.mxu0 %v874
    %v876 = vand.u32 %v233, 4294901760
    %v877 = vsub.f32 %v233, %v876
    %878 = vmatpush.msra.mxu0 %v877
    %v879 = vand.u32 %v232, 4294901760
    %v880 = vsub.f32 %v232, %v879
    %881 = vmatpush.msra.mxu0 %v880
    %v882 = vand.u32 %v231, 4294901760
    %v883 = vsub.f32 %v231, %v882
    %884 = vmatpush.msra.mxu0 %v883
    %v885 = vand.u32 %v302, 4294901760
    %v886 = vsub.f32 %v302, %v885
    %887 = vmatmul.f32.gmra.mxu0 %v886
    %v888 = vpop.f32.mrf.mxu0
    %v889 = vadd.f32 %v845, %v888
    %v890 = vand.u32 %v305, 4294901760
    %v891 = vsub.f32 %v305, %v890
    %892 = vmatmul.f32.gmra.mxu0 %v891
    %v893 = vpop.f32.mrf.mxu0
    %v894 = vadd.f32 %v849, %v893
    %v895 = vand.u32 %v308, 4294901760
    %v896 = vsub.f32 %v308, %v895
    %897 = vmatmul.f32.gmra.mxu0 %v896
    %v898 = vpop.f32.mrf.mxu0
    %v899 = vadd.f32 %v853, %v898
    %v900 = vand.u32 %v311, 4294901760
    %v901 = vsub.f32 %v311, %v900
    %902 = vmatmul.f32.gmra.mxu0 %v901
    %v903 = vpop.f32.mrf.mxu0
    %v904 = vadd.f32 %v857, %v903
    %905 = vdwg.mxu0
    %906 = vmatpush.msra.mxu0 0.0
    %907 = vmatpush.msra.mxu0 0.0
    %908 = vmatpush.msra.mxu0 0.0
    %909 = vmatpush.msra.mxu0 0.0
    %910 = vmatpush.msra.mxu0 0.0
    %911 = vmatpush.msra.mxu0 0.0
    %912 = vmatpush.msra.mxu0 0.0
    %913 = vmatpush.msra.mxu0 0.0
    %914 = vmatpush.msra.mxu0 0.0
    %915 = vmatpush.msra.mxu0 0.0
    %916 = vmatpush.msra.mxu0 0.0
    %v917 = vand.u32 %v235, 4294901760
    %918 = vmatpush.msra.mxu0 %v917
    %v919 = vand.u32 %v234, 4294901760
    %920 = vmatpush.msra.mxu0 %v919
    %v921 = vand.u32 %v233, 4294901760
    %922 = vmatpush.msra.mxu0 %v921
    %v923 = vand.u32 %v232, 4294901760
    %924 = vmatpush.msra.mxu0 %v923
    %v925 = vand.u32 %v231, 4294901760
    %926 = vmatpush.msra.mxu0 %v925
    %v927 = vand.u32 %v302, 4294901760
    %v928 = vsub.f32 %v302, %v927
    %v929 = vand.u32 %v928, 4294901760
    %930 = vmatmul.f32.gmra.mxu0 %v929
    %v931 = vpop.f32.mrf.mxu0
    %v932 = vadd.f32 %v889, %v931
    %v933 = vand.u32 %v305, 4294901760
    %v934 = vsub.f32 %v305, %v933
    %v935 = vand.u32 %v934, 4294901760
    %936 = vmatmul.f32.gmra.mxu0 %v935
    %v937 = vpop.f32.mrf.mxu0
    %v938 = vadd.f32 %v894, %v937
    %v939 = vand.u32 %v308, 4294901760
    %v940 = vsub.f32 %v308, %v939
    %v941 = vand.u32 %v940, 4294901760
    %942 = vmatmul.f32.gmra.mxu0 %v941
    %v943 = vpop.f32.mrf.mxu0
    %v944 = vadd.f32 %v899, %v943
    %v945 = vand.u32 %v311, 4294901760
    %v946 = vsub.f32 %v311, %v945
    %v947 = vand.u32 %v946, 4294901760
    %948 = vmatmul.f32.gmra.mxu0 %v947
    %v949 = vpop.f32.mrf.mxu0
    %v950 = vadd.f32 %v904, %v949
    %951 = vdwg.mxu0
    %952 = vmatpush.msra.mxu0 0.0
    %953 = vmatpush.msra.mxu0 0.0
    %954 = vmatpush.msra.mxu0 0.0
    %955 = vmatpush.msra.mxu0 0.0
    %956 = vmatpush.msra.mxu0 0.0
    %957 = vmatpush.msra.mxu0 0.0
    %958 = vmatpush.msra.mxu0 0.0
    %959 = vmatpush.msra.mxu0 0.0
    %960 = vmatpush.msra.mxu0 0.0
    %961 = vmatpush.msra.mxu0 0.0
    %962 = vmatpush.msra.mxu0 0.0
    %v963 = vand.u32 %v235, 4294901760
    %v964 = vsub.f32 %v235, %v963
    %v965 = vand.u32 %v964, 4294901760
    %966 = vmatpush.msra.mxu0 %v965
    %v967 = vand.u32 %v234, 4294901760
    %v968 = vsub.f32 %v234, %v967
    %v969 = vand.u32 %v968, 4294901760
    %970 = vmatpush.msra.mxu0 %v969
    %v971 = vand.u32 %v233, 4294901760
    %v972 = vsub.f32 %v233, %v971
    %v973 = vand.u32 %v972, 4294901760
    %974 = vmatpush.msra.mxu0 %v973
    %v975 = vand.u32 %v232, 4294901760
    %v976 = vsub.f32 %v232, %v975
    %v977 = vand.u32 %v976, 4294901760
    %978 = vmatpush.msra.mxu0 %v977
    %v979 = vand.u32 %v231, 4294901760
    %v980 = vsub.f32 %v231, %v979
    %v981 = vand.u32 %v980, 4294901760
    %982 = vmatpush.msra.mxu0 %v981
    %v983 = vand.u32 %v302, 4294901760
    %984 = vmatmul.f32.gmra.mxu0 %v983
    %v985 = vpop.f32.mrf.mxu0
    %v986 = vadd.f32 %v932, %v985
    %v987 = vand.u32 %v305, 4294901760
    %988 = vmatmul.f32.gmra.mxu0 %v987
    %v989 = vpop.f32.mrf.mxu0
    %v990 = vadd.f32 %v938, %v989
    %v991 = vand.u32 %v308, 4294901760
    %992 = vmatmul.f32.gmra.mxu0 %v991
    %v993 = vpop.f32.mrf.mxu0
    %v994 = vadd.f32 %v944, %v993
    %v995 = vand.u32 %v311, 4294901760
    %996 = vmatmul.f32.gmra.mxu0 %v995
    %v997 = vpop.f32.mrf.mxu0
    %v998 = vadd.f32 %v950, %v997
    %999 = vdwg.mxu0
    %1000 = vmatpush.msra.mxu0 0.0
    %1001 = vmatpush.msra.mxu0 0.0
    %1002 = vmatpush.msra.mxu0 0.0
    %1003 = vmatpush.msra.mxu0 0.0
    %1004 = vmatpush.msra.mxu0 0.0
    %1005 = vmatpush.msra.mxu0 0.0
    %1006 = vmatpush.msra.mxu0 0.0
    %1007 = vmatpush.msra.mxu0 0.0
    %1008 = vmatpush.msra.mxu0 0.0
    %1009 = vmatpush.msra.mxu0 0.0
    %1010 = vmatpush.msra.mxu0 0.0
    %v1011 = vand.u32 %v235, 4294901760
    %1012 = vmatpush.msra.mxu0 %v1011
    %v1013 = vand.u32 %v234, 4294901760
    %1014 = vmatpush.msra.mxu0 %v1013
    %v1015 = vand.u32 %v233, 4294901760
    %1016 = vmatpush.msra.mxu0 %v1015
    %v1017 = vand.u32 %v232, 4294901760
    %1018 = vmatpush.msra.mxu0 %v1017
    %v1019 = vand.u32 %v231, 4294901760
    %1020 = vmatpush.msra.mxu0 %v1019
    %v1021 = vand.u32 %v302, 4294901760
    %1022 = vmatmul.f32.gmra.mxu0 %v1021
    %v1023 = vpop.f32.mrf.mxu0
    %v1024 = vadd.f32 %v986, %v1023
    %v1025 = vand.u32 %v305, 4294901760
    %1026 = vmatmul.f32.gmra.mxu0 %v1025
    %v1027 = vpop.f32.mrf.mxu0
    %v1028 = vadd.f32 %v990, %v1027
    %v1029 = vand.u32 %v308, 4294901760
    %1030 = vmatmul.f32.gmra.mxu0 %v1029
    %v1031 = vpop.f32.mrf.mxu0
    %v1032 = vadd.f32 %v994, %v1031
    %v1033 = vand.u32 %v311, 4294901760
    %1034 = vmatmul.f32.gmra.mxu0 %v1033
    %v1035 = vpop.f32.mrf.mxu0
    %v1036 = vadd.f32 %v998, %v1035
    %1037 = vdwg.mxu0
    %1038 = vst [vmem:[#allocation7] sm:$0xff] %v1024
    %1039 = vst [vmem:[#allocation7 + $0x8] sm:$0xff] %v1028
    %1040 = vst [vmem:[#allocation7 + $0x10] sm:$0xff] %v1032
    %1041 = vst [vmem:[#allocation7 + $0x18] sm:$0xff] %v1036
    // Predicated region
    $region18: #{tpu_custom_call.1} parent=1 // pred_check
      _
    $region19: #{tpu_custom_call.1} parent=1 // pred_check_branch
      %1043 = sbr.rel (0) target = $region21
    $region20: #{tpu_custom_call.1} parent=1 // pred_region
      %1045 = vsyncadd [#allocation4], 0
      %s1046 = sshll.u32 [#allocation7], 4
      %s1047 = int_to_ptr.vmem [resolvable:$true] %s1046
      %s1048 = sshll.u32 %s2, 4
      %s1049 = int_to_ptr.hbm [resolvable:$true] %s1048
      %1054 = dma.vmem_to_hbm [thread:$0]  %s1047, 512, %s1049, [#allocation4], 128, 128, 8
    $region21: #{tpu_custom_call.1} parent=1 // pred_fallthru
      _
    // Predicated region
    $region22: #{tpu_custom_call.1} parent=1 // pred_check
      _
    $region23: #{tpu_custom_call.1} parent=1 // pred_check_branch
      %1056 = sbr.rel (0) target = $region25
    $region24: #{tpu_custom_call.1} parent=1 // pred_region
      %1058 = dma.done [#allocation4], 512
    $region25: #{tpu_custom_call.1} parent=1 // pred_fallthru
      _
    %1059 = vsyncpa [#allocation3], 1
    %1060 = vsyncpa [#allocation6], 1
    %1061 = vsyncpa [#allocation4], 1

</llo_original>
